<compile_context>
chip_gen: v7x
topology: tpu7x:2x2x1
jax: 0.10.0
libtpu: 0.0.40
codegen_flags: <defaults>
</compile_context>

<pallas_src>
import functools
import jax
import jax.numpy as jnp
from jax import lax
from jax.experimental import pallas as pl
from jax.experimental.pallas import tpu as pltpu


def _round_up(x, m):
    return ((x + m - 1) // m) * m


def _self_output_kernel(x_ref, res_ref, w_ref, b_ref, g_ref, beta_ref, o_ref, *, eps):
    # x_ref:   (tm, H) row tile of hidden_states           (native dtype)
    # res_ref: (tm, H) matching row tile of input_tensor   (native dtype)
    # w_ref:   (H, H)  dense weight in PyTorch (out, in) layout (native dtype)
    # b_ref, g_ref, beta_ref: (1, H) bias / LayerNorm gamma / beta
    #
    # Dense: y = x @ W^T.  Contract x dim 1 against W dim 1 (no transpose
    # materialized); MXU operands keep the input dtype, accumulation is f32.
    y = lax.dot_general(
        x_ref[...], w_ref[...],
        dimension_numbers=(((1,), (1,)), ((), ())),
        preferred_element_type=jnp.float32,
    )
    y = y + b_ref[...].astype(jnp.float32)

    # Dropout: identity in eval mode.
    # TODO(synk): training-mode dropout would use pltpu.prng_seed / prng_random_bits.

    # Residual add + LayerNorm over the last (lane) axis, all in f32.
    y = y + res_ref[...].astype(jnp.float32)
    mean = jnp.mean(y, axis=-1, keepdims=True)
    cen = y - mean
    var = jnp.mean(cen * cen, axis=-1, keepdims=True)
    norm = cen * lax.rsqrt(var + eps)
    out = norm * g_ref[...].astype(jnp.float32) + beta_ref[...].astype(jnp.float32)
    o_ref[...] = out.astype(o_ref.dtype)


def _build_call(M_pad, H, tm, dtype, eps, vmem_limit_bytes, cost, single_buffer_weight):
    if single_buffer_weight:
        # Weight block index is constant over the grid: one VMEM buffer suffices.
        w_spec = pl.BlockSpec((H, H), lambda i: (0, 0),
                              pipeline_mode=pl.Buffered(buffer_count=1))
    else:
        w_spec = pl.BlockSpec((H, H), lambda i: (0, 0))

    kernel = functools.partial(_self_output_kernel, eps=eps)
    return pl.pallas_call(
        kernel,
        out_shape=jax.ShapeDtypeStruct((M_pad, H), dtype),
        grid_spec=pltpu.PrefetchScalarGridSpec(
            num_scalar_prefetch=0,
            grid=(M_pad // tm,),
            in_specs=[
                pl.BlockSpec((tm, H), lambda i: (i, 0)),   # hidden rows
                pl.BlockSpec((tm, H), lambda i: (i, 0)),   # residual rows
                w_spec,                                    # weight (grid-invariant)
                pl.BlockSpec((1, H), lambda i: (0, 0)),    # bias
                pl.BlockSpec((1, H), lambda i: (0, 0)),    # gamma
                pl.BlockSpec((1, H), lambda i: (0, 0)),    # beta
            ],
            out_specs=pl.BlockSpec((tm, H), lambda i: (i, 0)),
        ),
        compiler_params=pltpu.CompilerParams(
            dimension_semantics=("parallel",),
            vmem_limit_bytes=vmem_limit_bytes,
        ),
        cost_estimate=cost,
    )


def longformer_self_output(hidden_states, input_tensor, weight, bias, gamma, beta,
                           *, eps=1e-12, block_rows=256):
    """hidden_states, input_tensor: (B, S, H). weight: (H, H) PyTorch (out, in) layout."""
    B, S, H = hidden_states.shape
    M = B * S
    dtype = hidden_states.dtype
    itemsize = jnp.dtype(dtype).itemsize
    # Sublane packing: (8,128) for 4-byte, (16,128) for 2-byte, (32,128) for 1-byte.
    sublane = {4: 8, 2: 16, 1: 32}.get(itemsize, 8)

    # Row tile: large (MXU-filling), sublane-aligned, but clamped so the grid
    # keeps >= 2 steps when M allows (v7x has 2 TensorCores to shard across).
    # NOTE(v7x): keep 6*tm*H*itemsize + 2*H*H*itemsize well under ~48 MiB
    # (64 MiB physical VMEM); the 256-row default is safe for H <= 2048.
    block_rows = max(sublane, _round_up(block_rows, sublane))
    half = max(sublane, _round_up(pl.cdiv(M, 2), sublane))
    tm = min(block_rows, half)

    x = hidden_states.reshape(M, H)
    res = input_tensor.reshape(M, H)
    w = weight.astype(dtype)          # MXU operands in the activation dtype
    b2 = bias.reshape(1, H)
    g2 = gamma.reshape(1, H)
    be2 = beta.reshape(1, H)

    # Pad rows to a tile multiple; matmul rows and per-row LayerNorm are
    # independent, so padded rows are simply sliced off afterwards.
    M_pad = _round_up(M, tm)
    if M_pad != M:
        x = jnp.pad(x, ((0, M_pad - M), (0, 0)))
        res = jnp.pad(res, ((0, M_pad - M), (0, 0)))

    # VMEM budget: 3 row tiles (x, res, out) double-buffered + weight (<=2 bufs).
    est = 6 * tm * H * itemsize + 2 * H * H * itemsize + (1 << 20)
    vmem_limit_bytes = int(min(max(2 * est, 32 * 1024 * 1024), 64 * 1024 * 1024))

    cost = pl.CostEstimate(
        flops=2 * M_pad * H * H,
        transcendentals=M_pad,                                   # one rsqrt per row
        bytes_accessed=(3 * M_pad * H + H * H + 3 * H) * itemsize,
    )

    try:
        call = _build_call(M_pad, H, tm, dtype, eps, vmem_limit_bytes, cost,
                           single_buffer_weight=True)
        out = call(x, res, w, b2, g2, be2)
    except Exception:
        # pipeline_mode=pl.Buffered may be unsupported on this JAX build; fall
        # back to the default double-buffered weight block (correctness identical).
        call = _build_call(M_pad, H, tm, dtype, eps, vmem_limit_bytes, cost,
                           single_buffer_weight=False)
        out = call(x, res, w, b2, g2, be2)

    return out[:M].reshape(B, S, H)


def _reference(hidden_states, input_tensor, weight, bias, gamma, beta, eps=1e-12):
    y = hidden_states @ weight.T + bias
    y = y + input_tensor
    mean = jnp.mean(y, axis=-1, keepdims=True)
    var = jnp.mean((y - mean) ** 2, axis=-1, keepdims=True)
    return (y - mean) * lax.rsqrt(var + eps) * gamma + beta


if __name__ == "__main__":
    key = jax.random.PRNGKey(0)
    k1, k2, k3, k4, k5, k6, k7 = jax.random.split(key, 7)

    # ---- Test 1: small f32 (H == full-block lane dim) ----------------------
    B, S, H = 2, 8, 32
    hidden_states = jax.random.normal(k1, (B, S, H), dtype=jnp.float32)
    input_tensor = jax.random.normal(k2, (B, S, H), dtype=jnp.float32)
    weight = jax.random.normal(k3, (H, H), dtype=jnp.float32) * (1.0 / jnp.sqrt(H))
    bias = jax.random.normal(k4, (H,), dtype=jnp.float32) * 0.01
    gamma = jnp.ones((H,), dtype=jnp.float32)
    beta = jnp.zeros((H,), dtype=jnp.float32)

    out = longformer_self_output(hidden_states, input_tensor, weight, bias, gamma, beta)
    out = jax.block_until_ready(out)
    ref = _reference(hidden_states, input_tensor, weight, bias, gamma, beta)
    assert out.shape == (B, S, H)
    assert jnp.allclose(out, ref, atol=5e-4, rtol=5e-4), "fp32 mismatch vs reference"

    # ---- Test 2: bf16 activations, non-divisible row count (exercises padding,
    #              bf16 sublane tiling, multi-step grid) ---------------------
    B2, S2, H2 = 1, 40, 128
    h2 = jax.random.normal(k5, (B2, S2, H2), dtype=jnp.float32).astype(jnp.bfloat16)
    r2 = jax.random.normal(k6, (B2, S2, H2), dtype=jnp.float32).astype(jnp.bfloat16)
    w2 = jax.random.normal(k7, (H2, H2), dtype=jnp.float32) * (1.0 / jnp.sqrt(H2))
    b2_ = jnp.zeros((H2,), dtype=jnp.float32)
    g2_ = jnp.ones((H2,), dtype=jnp.float32)
    be2_ = jnp.zeros((H2,), dtype=jnp.float32)

    out2 = longformer_self_output(h2, r2, w2, b2_, g2_, be2_)
    out2 = jax.block_until_ready(out2)
    ref2 = _reference(h2.astype(jnp.float32), r2.astype(jnp.float32),
                      w2.astype(jnp.bfloat16).astype(jnp.float32), b2_, g2_, be2_)
    assert out2.shape == (B2, S2, H2) and out2.dtype == jnp.bfloat16
    assert jnp.allclose(out2.astype(jnp.float32), ref2, atol=5e-2, rtol=5e-2), \
        "bf16 mismatch vs reference"

    print("KERNEL_OK")
</pallas_src>

<mosaic_0001>
module attributes {stable_mosaic.version = 11 : i64} {
  func.func @_self_output_kernel(%arg0: i32, %arg1: memref<8x32xf32, #tpu.memory_space<vmem>>, %arg2: memref<8x32xf32, #tpu.memory_space<vmem>>, %arg3: memref<32x32xf32, #tpu.memory_space<vmem>>, %arg4: memref<1x32xf32, #tpu.memory_space<vmem>>, %arg5: memref<1x32xf32, #tpu.memory_space<vmem>>, %arg6: memref<1x32xf32, #tpu.memory_space<vmem>>, %arg7: memref<8x32xf32, #tpu.memory_space<vmem>>) attributes {dimension_semantics = [#tpu.dimension_semantics<parallel>], iteration_bounds = array<i64: 2>, scalar_prefetch = 0 : i64, scratch_operands = 0 : i64, tpu.core_type = #tpu.core_type<tc>, window_params = [{transform_indices = @transform_0, window_bounds = array<i64: 8, 32>}, {transform_indices = @transform_1, window_bounds = array<i64: 8, 32>}, {pipeline_mode = #tpu.pipeline_mode<synchronous>, transform_indices = @transform_2, window_bounds = array<i64: 32, 32>}, {pipeline_mode = #tpu.pipeline_mode<synchronous>, transform_indices = @transform_3, window_bounds = array<i64: 1, 32>}, {pipeline_mode = #tpu.pipeline_mode<synchronous>, transform_indices = @transform_4, window_bounds = array<i64: 1, 32>}, {pipeline_mode = #tpu.pipeline_mode<synchronous>, transform_indices = @transform_5, window_bounds = array<i64: 1, 32>}, {transform_indices = @transform_6, window_bounds = array<i64: 8, 32>}]} {
    %c0 = arith.constant 0 : index
    %c0_0 = arith.constant 0 : index
    %0 = vector.load %arg1[%c0, %c0_0] : memref<8x32xf32, #tpu.memory_space<vmem>>, vector<8x32xf32>
    %c0_1 = arith.constant 0 : index
    %c0_2 = arith.constant 0 : index
    %1 = vector.load %arg3[%c0_1, %c0_2] : memref<32x32xf32, #tpu.memory_space<vmem>>, vector<32x32xf32>
    %cst = arith.constant dense<0.000000e+00> : vector<8x32xf32>
    %2 = tpu.matmul %0, %1, %cst {dimension_numbers = #tpu.dot_dimension_numbers<[1], [1], [0], [0], [0, 0, 1, 0], [], []>} : vector<8x32xf32>, vector<32x32xf32>, vector<8x32xf32> -> vector<8x32xf32>
    %c0_3 = arith.constant 0 : index
    %c0_4 = arith.constant 0 : index
    %3 = vector.load %arg4[%c0_3, %c0_4] : memref<1x32xf32, #tpu.memory_space<vmem>>, vector<1x32xf32>
    %4 = vector.broadcast %3 : vector<1x32xf32> to vector<8x32xf32>
    %5 = arith.addf %2, %4 : vector<8x32xf32>
    %c0_5 = arith.constant 0 : index
    %c0_6 = arith.constant 0 : index
    %6 = vector.load %arg2[%c0_5, %c0_6] : memref<8x32xf32, #tpu.memory_space<vmem>>, vector<8x32xf32>
    %7 = arith.addf %5, %6 : vector<8x32xf32>
    %cst_7 = arith.constant dense<0.000000e+00> : vector<8xf32>
    %8 = vector.multi_reduction <add>, %7, %cst_7 [1] : vector<8x32xf32> to vector<8xf32>
    %9 = vector.shape_cast %8 : vector<8xf32> to vector<8x1xf32>
    %cst_8 = arith.constant 3.200000e+01 : f32
    %10 = vector.broadcast %cst_8 : f32 to vector<8x1xf32>
    %11 = arith.divf %9, %10 : vector<8x1xf32>
    %12 = vector.broadcast %11 : vector<8x1xf32> to vector<8x32xf32>
    %13 = arith.subf %7, %12 : vector<8x32xf32>
    %14 = arith.mulf %13, %13 : vector<8x32xf32>
    %cst_9 = arith.constant dense<0.000000e+00> : vector<8xf32>
    %15 = vector.multi_reduction <add>, %14, %cst_9 [1] : vector<8x32xf32> to vector<8xf32>
    %16 = vector.shape_cast %15 : vector<8xf32> to vector<8x1xf32>
    %cst_10 = arith.constant 3.200000e+01 : f32
    %17 = vector.broadcast %cst_10 : f32 to vector<8x1xf32>
    %18 = arith.divf %16, %17 : vector<8x1xf32>
    %cst_11 = arith.constant 9.99999996E-13 : f32
    %19 = vector.broadcast %cst_11 : f32 to vector<8x1xf32>
    %20 = arith.addf %18, %19 : vector<8x1xf32>
    %21 = math.rsqrt %20 : vector<8x1xf32>
    %22 = vector.broadcast %21 : vector<8x1xf32> to vector<8x32xf32>
    %23 = arith.mulf %13, %22 : vector<8x32xf32>
    %c0_12 = arith.constant 0 : index
    %c0_13 = arith.constant 0 : index
    %24 = vector.load %arg5[%c0_12, %c0_13] : memref<1x32xf32, #tpu.memory_space<vmem>>, vector<1x32xf32>
    %25 = vector.broadcast %24 : vector<1x32xf32> to vector<8x32xf32>
    %26 = arith.mulf %23, %25 : vector<8x32xf32>
    %c0_14 = arith.constant 0 : index
    %c0_15 = arith.constant 0 : index
    %27 = vector.load %arg6[%c0_14, %c0_15] : memref<1x32xf32, #tpu.memory_space<vmem>>, vector<1x32xf32>
    %28 = vector.broadcast %27 : vector<1x32xf32> to vector<8x32xf32>
    %29 = arith.addf %26, %28 : vector<8x32xf32>
    %c0_16 = arith.constant 0 : index
    %c0_17 = arith.constant 0 : index
    %30 = vector.load %arg7[%c0_16, %c0_17] : memref<8x32xf32, #tpu.memory_space<vmem>>, vector<8x32xf32>
    tpu.vector_store %arg7[%c0_16, %c0_17], %29 {strides = array<i32>} : memref<8x32xf32, #tpu.memory_space<vmem>>, vector<8x32xf32>,
    return
  }
  func.func @transform_0(%arg0: i32) -> (i32, i32) {
    %c0_i32 = arith.constant 0 : i32
    %c0_i32_0 = arith.constant 0 : i32
    return %arg0, %c0_i32 : i32, i32
  }
  func.func @transform_1(%arg0: i32) -> (i32, i32) {
    %c0_i32 = arith.constant 0 : i32
    %c0_i32_0 = arith.constant 0 : i32
    return %arg0, %c0_i32 : i32, i32
  }
  func.func @transform_2(%arg0: i32) -> (i32, i32) {
    %c0_i32 = arith.constant 0 : i32
    %c0_i32_0 = arith.constant 0 : i32
    %c0_i32_1 = arith.constant 0 : i32
    return %c0_i32, %c0_i32_0 : i32, i32
  }
  func.func @transform_3(%arg0: i32) -> (i32, i32) {
    %c0_i32 = arith.constant 0 : i32
    %c0_i32_0 = arith.constant 0 : i32
    %c0_i32_1 = arith.constant 0 : i32
    return %c0_i32, %c0_i32_0 : i32, i32
  }
  func.func @transform_4(%arg0: i32) -> (i32, i32) {
    %c0_i32 = arith.constant 0 : i32
    %c0_i32_0 = arith.constant 0 : i32
    %c0_i32_1 = arith.constant 0 : i32
    return %c0_i32, %c0_i32_0 : i32, i32
  }
  func.func @transform_5(%arg0: i32) -> (i32, i32) {
    %c0_i32 = arith.constant 0 : i32
    %c0_i32_0 = arith.constant 0 : i32
    %c0_i32_1 = arith.constant 0 : i32
    return %c0_i32, %c0_i32_0 : i32, i32
  }
  func.func @transform_6(%arg0: i32) -> (i32, i32) {
    %c0_i32 = arith.constant 0 : i32
    %c0_i32_0 = arith.constant 0 : i32
    return %arg0, %c0_i32 : i32, i32
  }
}

module attributes {stable_mosaic.version = 11 : i64} {
  func.func @_self_output_kernel(%arg0: i32, %arg1: memref<8x32xf32, #tpu.memory_space<vmem>>, %arg2: memref<8x32xf32, #tpu.memory_space<vmem>>, %arg3: memref<32x32xf32, #tpu.memory_space<vmem>>, %arg4: memref<1x32xf32, #tpu.memory_space<vmem>>, %arg5: memref<1x32xf32, #tpu.memory_space<vmem>>, %arg6: memref<1x32xf32, #tpu.memory_space<vmem>>, %arg7: memref<8x32xf32, #tpu.memory_space<vmem>>) attributes {dimension_semantics = [#tpu.dimension_semantics<parallel>], iteration_bounds = array<i64: 2>, scalar_prefetch = 0 : i64, scratch_operands = 0 : i64, tpu.core_type = #tpu.core_type<tc>, window_params = [{transform_indices = @transform_0, window_bounds = array<i64: 8, 32>}, {transform_indices = @transform_1, window_bounds = array<i64: 8, 32>}, {pipeline_mode = #tpu.pipeline_mode<synchronous>, transform_indices = @transform_2, window_bounds = array<i64: 32, 32>}, {pipeline_mode = #tpu.pipeline_mode<synchronous>, transform_indices = @transform_3, window_bounds = array<i64: 1, 32>}, {pipeline_mode = #tpu.pipeline_mode<synchronous>, transform_indices = @transform_4, window_bounds = array<i64: 1, 32>}, {pipeline_mode = #tpu.pipeline_mode<synchronous>, transform_indices = @transform_5, window_bounds = array<i64: 1, 32>}, {transform_indices = @transform_6, window_bounds = array<i64: 8, 32>}]} {
    %c0 = arith.constant 0 : index
    %c0_0 = arith.constant 0 : index
    %0 = vector.load %arg1[%c0, %c0_0] : memref<8x32xf32, #tpu.memory_space<vmem>>, vector<8x32xf32>
    %c0_1 = arith.constant 0 : index
    %c0_2 = arith.constant 0 : index
    %1 = vector.load %arg3[%c0_1, %c0_2] : memref<32x32xf32, #tpu.memory_space<vmem>>, vector<32x32xf32>
    %cst = arith.constant dense<0.000000e+00> : vector<8x32xf32>
    %2 = tpu.matmul %0, %1, %cst {dimension_numbers = #tpu.dot_dimension_numbers<[1], [1], [0], [0], [0, 0, 1, 0], [], []>} : vector<8x32xf32>, vector<32x32xf32>, vector<8x32xf32> -> vector<8x32xf32>
    %c0_3 = arith.constant 0 : index
    %c0_4 = arith.constant 0 : index
    %3 = vector.load %arg4[%c0_3, %c0_4] : memref<1x32xf32, #tpu.memory_space<vmem>>, vector<1x32xf32>
    %4 = vector.broadcast %3 : vector<1x32xf32> to vector<8x32xf32>
    %5 = arith.addf %2, %4 : vector<8x32xf32>
    %c0_5 = arith.constant 0 : index
    %c0_6 = arith.constant 0 : index
    %6 = vector.load %arg2[%c0_5, %c0_6] : memref<8x32xf32, #tpu.memory_space<vmem>>, vector<8x32xf32>
    %7 = arith.addf %5, %6 : vector<8x32xf32>
    %cst_7 = arith.constant dense<0.000000e+00> : vector<8xf32>
    %8 = vector.multi_reduction <add>, %7, %cst_7 [1] : vector<8x32xf32> to vector<8xf32>
    %9 = vector.shape_cast %8 : vector<8xf32> to vector<8x1xf32>
    %cst_8 = arith.constant 3.200000e+01 : f32
    %10 = vector.broadcast %cst_8 : f32 to vector<8x1xf32>
    %11 = arith.divf %9, %10 : vector<8x1xf32>
    %12 = vector.broadcast %11 : vector<8x1xf32> to vector<8x32xf32>
    %13 = arith.subf %7, %12 : vector<8x32xf32>
    %14 = arith.mulf %13, %13 : vector<8x32xf32>
    %cst_9 = arith.constant dense<0.000000e+00> : vector<8xf32>
    %15 = vector.multi_reduction <add>, %14, %cst_9 [1] : vector<8x32xf32> to vector<8xf32>
    %16 = vector.shape_cast %15 : vector<8xf32> to vector<8x1xf32>
    %cst_10 = arith.constant 3.200000e+01 : f32
    %17 = vector.broadcast %cst_10 : f32 to vector<8x1xf32>
    %18 = arith.divf %16, %17 : vector<8x1xf32>
    %cst_11 = arith.constant 9.99999996E-13 : f32
    %19 = vector.broadcast %cst_11 : f32 to vector<8x1xf32>
    %20 = arith.addf %18, %19 : vector<8x1xf32>
    %21 = math.rsqrt %20 : vector<8x1xf32>
    %22 = vector.broadcast %21 : vector<8x1xf32> to vector<8x32xf32>
    %23 = arith.mulf %13, %22 : vector<8x32xf32>
    %c0_12 = arith.constant 0 : index
    %c0_13 = arith.constant 0 : index
    %24 = vector.load %arg5[%c0_12, %c0_13] : memref<1x32xf32, #tpu.memory_space<vmem>>, vector<1x32xf32>
    %25 = vector.broadcast %24 : vector<1x32xf32> to vector<8x32xf32>
    %26 = arith.mulf %23, %25 : vector<8x32xf32>
    %c0_14 = arith.constant 0 : index
    %c0_15 = arith.constant 0 : index
    %27 = vector.load %arg6[%c0_14, %c0_15] : memref<1x32xf32, #tpu.memory_space<vmem>>, vector<1x32xf32>
    %28 = vector.broadcast %27 : vector<1x32xf32> to vector<8x32xf32>
    %29 = arith.addf %26, %28 : vector<8x32xf32>
    %c0_16 = arith.constant 0 : index
    %c0_17 = arith.constant 0 : index
    %30 = vector.load %arg7[%c0_16, %c0_17] : memref<8x32xf32, #tpu.memory_space<vmem>>, vector<8x32xf32>
    tpu.vector_store %arg7[%c0_16, %c0_17], %29 {strides = array<i32>} : memref<8x32xf32, #tpu.memory_space<vmem>>, vector<8x32xf32>,
    return
  }
  func.func @transform_0(%arg0: i32) -> (i32, i32) {
    %c0_i32 = arith.constant 0 : i32
    %c0_i32_0 = arith.constant 0 : i32
    return %arg0, %c0_i32 : i32, i32
  }
  func.func @transform_1(%arg0: i32) -> (i32, i32) {
    %c0_i32 = arith.constant 0 : i32
    %c0_i32_0 = arith.constant 0 : i32
    return %arg0, %c0_i32 : i32, i32
  }
  func.func @transform_2(%arg0: i32) -> (i32, i32) {
    %c0_i32 = arith.constant 0 : i32
    %c0_i32_0 = arith.constant 0 : i32
    %c0_i32_1 = arith.constant 0 : i32
    return %c0_i32, %c0_i32_0 : i32, i32
  }
  func.func @transform_3(%arg0: i32) -> (i32, i32) {
    %c0_i32 = arith.constant 0 : i32
    %c0_i32_0 = arith.constant 0 : i32
    %c0_i32_1 = arith.constant 0 : i32
    return %c0_i32, %c0_i32_0 : i32, i32
  }
  func.func @transform_4(%arg0: i32) -> (i32, i32) {
    %c0_i32 = arith.constant 0 : i32
    %c0_i32_0 = arith.constant 0 : i32
    %c0_i32_1 = arith.constant 0 : i32
    return %c0_i32, %c0_i32_0 : i32, i32
  }
  func.func @transform_5(%arg0: i32) -> (i32, i32) {
    %c0_i32 = arith.constant 0 : i32
    %c0_i32_0 = arith.constant 0 : i32
    %c0_i32_1 = arith.constant 0 : i32
    return %c0_i32, %c0_i32_0 : i32, i32
  }
  func.func @transform_6(%arg0: i32) -> (i32, i32) {
    %c0_i32 = arith.constant 0 : i32
    %c0_i32_0 = arith.constant 0 : i32
    return %arg0, %c0_i32 : i32, i32
  }
}

</mosaic_0001>

<llo_original>
// kernel: tpu_custom_call.1
$region0: #{tpu_custom_call.1}
  #allocation0 [shape = 'u32[]', space=smem, size = 0x4, offset = 0x4, fixed_abs, tag = 'smem constant byte address 0x4 - core index']
  #allocation1 [shape = 'u32[144,128]{1,0:T(1,128)}', space=vmem, size = 0x12000, scoped, tag = 'internal scratch']
  %s0 = inlined_call_operand.hbm [shape: f32[16,32], index: 0, kind: input, shape index: {}]
  %s1 = inlined_call_operand.hbm [shape: f32[16,32], index: 1, kind: input, shape index: {}]
  %s2 = inlined_call_operand.hbm [shape: f32[32,32], index: 2, kind: input, shape index: {}]
  %s3 = inlined_call_operand.vmem [shape: f32[1,32], index: 3, kind: input, shape index: {}]
  %s4 = inlined_call_operand.vmem [shape: f32[1,32], index: 4, kind: input, shape index: {}]
  %s5 = inlined_call_operand.vmem [shape: f32[1,32], index: 5, kind: input, shape index: {}]
  %s6 = inlined_call_operand.hbm [shape: f32[16,32], index: 6, kind: output, shape index: {}]
  %s7 = sld [smem:[#allocation0]]
  $region69: #{tpu_custom_call.1} parent=0
    _
  %s9 = ssub.s32 1, %s7
  %s10 = scalar_select 0, %s9, %s7
  $region1: #{tpu_custom_call.1} parent=0
    #allocation2 [shape = 'u8[8192]{0}', space=vmem, size = 0x2000, scoped, tag = 'input window, operand 0']
    #allocation3 [shape = 's32[2]{0}', space=sflag, size = 0x8, scoped, tag = 'scoped memory for tpu_custom_call.1']
    #allocation4 [shape = 's32[2]{0}', space=sflag, size = 0x8, scoped, tag = 'scoped memory for tpu_custom_call.1']
    #allocation5 [shape = 'u8[8192]{0}', space=vmem, size = 0x2000, scoped, tag = 'input window, operand 1']
    #allocation6 [shape = 's32[2]{0}', space=sflag, size = 0x8, scoped, tag = 'scoped memory for tpu_custom_call.1']
    #allocation7 [shape = 'u8[16384]{0}', space=vmem, size = 0x4000, scoped, tag = 'input window, operand 2, single buffered']
    #allocation8 [shape = 'u8[8192]{0}', space=vmem, size = 0x2000, scoped, tag = 'output window, operand 0']
    %11 = vsyncpa [#allocation3], 0
    %s12 = scalar_lea.sflag [#allocation3], 1
    %13 = vsyncpa %s12, 0
    %14 = vsyncpa [#allocation6], 0
    %s15 = scalar_lea.sflag [#allocation6], 1
    %16 = vsyncpa %s15, 0
    %17 = vsyncpa [#allocation4], 0
    %s18 = scalar_lea.sflag [#allocation4], 1
    %19 = vsyncpa %s18, 0
    loop: start=0, step=1, limit=4
    $region2: #{tpu_custom_call.1} parent=1 // loop_pre_header
      _
    $region3: #{tpu_custom_call.1} parent=1 // loop_header
      %s21 = sphi 0, %s25
      %p22 = scmp.ge.s32.totalorder %s21, 4
      %s31 = sphi 0, %s33
      %s34 = sphi 0, %s31
      %s35 = sphi 0, %s34
      %s51 = sphi 0, %s35
      %s57 = sphi 0, %s59
      %s60 = sphi 0, %s57
      %s61 = sphi 0, %s60
      %s77 = sphi 0, %s61
      %s81 = sphi 0, %s81
      %s83 = sphi 0, %s81
      %s84 = sphi 0, %s83
      %s98 = sphi 0, %s84
      %s102 = sphi 0, %s102
      %s104 = sphi 0, %s102
      %s105 = sphi 0, %s104
      %s119 = sphi 0, %s105
      %s123 = sphi 0, %s123
      %s125 = sphi 0, %s123
      %s126 = sphi 0, %s125
      %s140 = sphi 0, %s126
      %s144 = sphi 0, %s144
      %s146 = sphi 0, %s144
      %s147 = sphi 0, %s146
      %s161 = sphi 0, %s147
      %s167 = sphi 0, %s169
      %s170 = sphi 0, %s167
      %s171 = sphi 0, %s170
      %s187 = sphi 0, %s171
    $region4: #{tpu_custom_call.1} parent=1 // loop_header_branch
      %24 = sbr.rel (%p22) target = $region8
    $region5: #{tpu_custom_call.1} parent=1 // loop_body
      %s26 = ssub.s32 %s21, 1
      %s27 = ssub.s32 %s21, 2
      %s28 = sadd.s32 %s21, 1
      %s29 = ssub.s32 %s21, %s28
      %p30 = scmp.eq.s32.totalorder %s29, 0
      %s32 = sadd.s32 %s31, 1
      %s33 = scalar_select %p30, %s31, %s32
      %p36 = pneg %p30
      %p37 = scmp.eq.s32.totalorder %s21, 1
      %p38 = por %p36, %p37
      %p39 = scmp.ne.s32.totalorder %s31, %s34
      %p40 = scmp.eq.s32.totalorder %s21, 0
      %p41 = por %p39, %p40
      %p42 = scmp.ne.s32.totalorder %s31, %s34
      %p43 = scmp.eq.s32.totalorder %s26, 1
      %p44 = por %p42, %p43
      %p45 = scmp.ne.s32.totalorder %s34, %s35
      %p46 = scmp.eq.s32.totalorder %s26, 0
      %p47 = por %p45, %p46
      %p48 = scmp.ne.s32.totalorder %s34, %s35
      %p49 = scmp.eq.s32.totalorder %s27, 1
      %p50 = por %p48, %p49
      %p52 = scmp.ne.s32.totalorder %s35, %s51
      %p53 = scmp.eq.s32.totalorder %s27, 0
      %p54 = por %p52, %p53
      %s55 = ssub.s32 %s21, %s28
      %p56 = scmp.eq.s32.totalorder %s55, 0
      %s58 = sadd.s32 %s57, 1
      %s59 = scalar_select %p56, %s57, %s58
      %p62 = pneg %p56
      %p63 = scmp.eq.s32.totalorder %s21, 1
      %p64 = por %p62, %p63
      %p65 = scmp.ne.s32.totalorder %s57, %s60
      %p66 = scmp.eq.s32.totalorder %s21, 0
      %p67 = por %p65, %p66
      %p68 = scmp.ne.s32.totalorder %s57, %s60
      %p69 = scmp.eq.s32.totalorder %s26, 1
      %p70 = por %p68, %p69
      %p71 = scmp.ne.s32.totalorder %s60, %s61
      %p72 = scmp.eq.s32.totalorder %s26, 0
      %p73 = por %p71, %p72
      %p74 = scmp.ne.s32.totalorder %s60, %s61
      %p75 = scmp.eq.s32.totalorder %s27, 1
      %p76 = por %p74, %p75
      %p78 = scmp.ne.s32.totalorder %s61, %s77
      %p79 = scmp.eq.s32.totalorder %s27, 0
      %p80 = por %p78, %p79
      %s82 = sadd.s32 %s81, 1
      %p85 = scmp.eq.s32.totalorder %s21, 1
      %p86 = scmp.ne.s32.totalorder %s81, %s83
      %p87 = scmp.eq.s32.totalorder %s21, 0
      %p88 = por %p86, %p87
      %p89 = scmp.ne.s32.totalorder %s81, %s83
      %p90 = scmp.eq.s32.totalorder %s26, 1
      %p91 = por %p89, %p90
      %p92 = scmp.ne.s32.totalorder %s83, %s84
      %p93 = scmp.eq.s32.totalorder %s26, 0
      %p94 = por %p92, %p93
      %p95 = scmp.ne.s32.totalorder %s83, %s84
      %p96 = scmp.eq.s32.totalorder %s27, 1
      %p97 = por %p95, %p96
      %p99 = scmp.ne.s32.totalorder %s84, %s98
      %p100 = scmp.eq.s32.totalorder %s27, 0
      %p101 = por %p99, %p100
      %s103 = sadd.s32 %s102, 1
      %p106 = scmp.eq.s32.totalorder %s21, 1
      %p107 = scmp.ne.s32.totalorder %s102, %s104
      %p108 = scmp.eq.s32.totalorder %s21, 0
      %p109 = por %p107, %p108
      %p110 = scmp.ne.s32.totalorder %s102, %s104
      %p111 = scmp.eq.s32.totalorder %s26, 1
      %p112 = por %p110, %p111
      %p113 = scmp.ne.s32.totalorder %s104, %s105
      %p114 = scmp.eq.s32.totalorder %s26, 0
      %p115 = por %p113, %p114
      %p116 = scmp.ne.s32.totalorder %s104, %s105
      %p117 = scmp.eq.s32.totalorder %s27, 1
      %p118 = por %p116, %p117
      %p120 = scmp.ne.s32.totalorder %s105, %s119
      %p121 = scmp.eq.s32.totalorder %s27, 0
      %p122 = por %p120, %p121
      %s124 = sadd.s32 %s123, 1
      %p127 = scmp.eq.s32.totalorder %s21, 1
      %p128 = scmp.ne.s32.totalorder %s123, %s125
      %p129 = scmp.eq.s32.totalorder %s21, 0
      %p130 = por %p128, %p129
      %p131 = scmp.ne.s32.totalorder %s123, %s125
      %p132 = scmp.eq.s32.totalorder %s26, 1
      %p133 = por %p131, %p132
      %p134 = scmp.ne.s32.totalorder %s125, %s126
      %p135 = scmp.eq.s32.totalorder %s26, 0
      %p136 = por %p134, %p135
      %p137 = scmp.ne.s32.totalorder %s125, %s126
      %p138 = scmp.eq.s32.totalorder %s27, 1
      %p139 = por %p137, %p138
      %p141 = scmp.ne.s32.totalorder %s126, %s140
      %p142 = scmp.eq.s32.totalorder %s27, 0
      %p143 = por %p141, %p142
      %s145 = sadd.s32 %s144, 1
      %p148 = scmp.eq.s32.totalorder %s21, 1
      %p149 = scmp.ne.s32.totalorder %s144, %s146
      %p150 = scmp.eq.s32.totalorder %s21, 0
      %p151 = por %p149, %p150
      %p152 = scmp.ne.s32.totalorder %s144, %s146
      %p153 = scmp.eq.s32.totalorder %s26, 1
      %p154 = por %p152, %p153
      %p155 = scmp.ne.s32.totalorder %s146, %s147
      %p156 = scmp.eq.s32.totalorder %s26, 0
      %p157 = por %p155, %p156
      %p158 = scmp.ne.s32.totalorder %s146, %s147
      %p159 = scmp.eq.s32.totalorder %s27, 1
      %p160 = por %p158, %p159
      %p162 = scmp.ne.s32.totalorder %s147, %s161
      %p163 = scmp.eq.s32.totalorder %s27, 0
      %p164 = por %p162, %p163
      %s165 = ssub.s32 %s21, %s28
      %p166 = scmp.eq.s32.totalorder %s165, 0
      %s168 = sadd.s32 %s167, 1
      %s169 = scalar_select %p166, %s167, %s168
      %p172 = pneg %p166
      %p173 = scmp.eq.s32.totalorder %s21, 1
      %p174 = por %p172, %p173
      %p175 = scmp.ne.s32.totalorder %s167, %s170
      %p176 = scmp.eq.s32.totalorder %s21, 0
      %p177 = por %p175, %p176
      %p178 = scmp.ne.s32.totalorder %s167, %s170
      %p179 = scmp.eq.s32.totalorder %s26, 1
      %p180 = por %p178, %p179
      %p181 = scmp.ne.s32.totalorder %s170, %s171
      %p182 = scmp.eq.s32.totalorder %s26, 0
      %p183 = por %p181, %p182
      %p184 = scmp.ne.s32.totalorder %s170, %s171
      %p185 = scmp.eq.s32.totalorder %s27, 1
      %p186 = por %p184, %p185
      %p188 = scmp.ne.s32.totalorder %s171, %s187
      %p189 = scmp.eq.s32.totalorder %s27, 0
      %p190 = por %p188, %p189
      %p191 = scmp.le.s32.totalorder 1, %s21
      %p192 = scmp.lt.s32.totalorder %s21, 3
      %p193 = pnand %p191, %p192
      %p194 = pneg %p193
      // Predicated region
      $region9: #{tpu_custom_call.1} parent=5 // pred_check
        _
      $region10: #{tpu_custom_call.1} parent=5 // pred_check_branch
        %196 = sbr.rel (%p193) target = $region12
      $region11: #{tpu_custom_call.1} parent=5 // pred_region
        %s197 = ssub.s32 %s21, 1
        // Predicated region
        $region13: #{tpu_custom_call.1} parent=11 // pred_check
          %p198 = pneg %p94
        $region14: #{tpu_custom_call.1} parent=11 // pred_check_branch
          %200 = sbr.rel (%p198) target = $region16
        $region15: #{tpu_custom_call.1} parent=11 // pred_region
          %s202 = ssub.s32 512, 512
          %203 = vsyncadd [#allocation6], %s202
          %s204 = sshll.u32 [#allocation7], 4
          %s205 = int_to_ptr.vmem [resolvable:$true] %s204
          %210 = dma.hbm_to_vmem [thread:$0]  %s2, 512, %s205, [#allocation6], 128, 128, 8
        $region16: #{tpu_custom_call.1} parent=11 // pred_fallthru
          _
        // Predicated region
        $region17: #{tpu_custom_call.1} parent=11 // pred_check
          %p211 = pneg %p115
        $region18: #{tpu_custom_call.1} parent=11 // pred_check_branch
          %213 = sbr.rel (%p211) target = $region20
        $region19: #{tpu_custom_call.1} parent=11 // pred_region
          _
        $region20: #{tpu_custom_call.1} parent=11 // pred_fallthru
          _
        // Predicated region
        $region21: #{tpu_custom_call.1} parent=11 // pred_check
          %p214 = pneg %p136
        $region22: #{tpu_custom_call.1} parent=11 // pred_check_branch
          %216 = sbr.rel (%p214) target = $region24
        $region23: #{tpu_custom_call.1} parent=11 // pred_region
          _
        $region24: #{tpu_custom_call.1} parent=11 // pred_fallthru
          _
        // Predicated region
        $region25: #{tpu_custom_call.1} parent=11 // pred_check
          %p217 = pneg %p157
        $region26: #{tpu_custom_call.1} parent=11 // pred_check_branch
          %219 = sbr.rel (%p217) target = $region28
        $region27: #{tpu_custom_call.1} parent=11 // pred_region
          _
        $region28: #{tpu_custom_call.1} parent=11 // pred_fallthru
          _
      $region12: #{tpu_custom_call.1} parent=5 // pred_fallthru
        _
      %p220 = scmp.lt.s32.totalorder %s21, 2
      // Predicated region
      $region29: #{tpu_custom_call.1} parent=5 // pred_check
        %p221 = pneg %p220
      $region30: #{tpu_custom_call.1} parent=5 // pred_check_branch
        %223 = sbr.rel (%p221) target = $region32
      $region31: #{tpu_custom_call.1} parent=5 // pred_region
        // Predicated region
        $region33: #{tpu_custom_call.1} parent=31 // pred_check
          %p224 = pneg %p41
        $region34: #{tpu_custom_call.1} parent=31 // pred_check_branch
          %226 = sbr.rel (%p224) target = $region36
        $region35: #{tpu_custom_call.1} parent=31 // pred_region
          %s227 = sand.u32 %s31, 1
          %s228 = scalar_lea.sflag [#allocation3], %s227
          %s229 = sand.u32 %s31, 1
          %s230 = smul.addr %s229, 8
          %s231 = scalar_lea.vmem [#allocation2], %s230
          %s233 = ssub.s32 128, 128
          %234 = vsyncadd %s228, %s233
          %s235 = smul.addr %s21, 128
          %s236 = scalar_lea.hbm %s0, %s235
          %s238 = sshll.u32 %s231, 4
          %s239 = int_to_ptr.vmem [resolvable:$true] %s238
          %241 = dma.hbm_to_vmem [thread:$0]  %s236, 128, %s239, %s228
        $region36: #{tpu_custom_call.1} parent=31 // pred_fallthru
          _
        // Predicated region
        $region37: #{tpu_custom_call.1} parent=31 // pred_check
          %p242 = pneg %p67
        $region38: #{tpu_custom_call.1} parent=31 // pred_check_branch
          %244 = sbr.rel (%p242) target = $region40
        $region39: #{tpu_custom_call.1} parent=31 // pred_region
          %s245 = sand.u32 %s21, 1
          %s246 = scalar_lea.sflag [#allocation6], %s245
          %s247 = sand.u32 %s57, 1
          %s248 = smul.addr %s247, 8
          %s249 = scalar_lea.vmem [#allocation5], %s248
          %s251 = ssub.s32 128, 128
          %252 = vsyncadd %s246, %s251
          %s253 = smul.addr %s21, 128
          %s254 = scalar_lea.hbm %s1, %s253
          %s256 = sshll.u32 %s249, 4
          %s257 = int_to_ptr.vmem [resolvable:$true] %s256
          %259 = dma.hbm_to_vmem [thread:$0]  %s254, 128, %s257, %s246
        $region40: #{tpu_custom_call.1} parent=31 // pred_fallthru
          _
      $region32: #{tpu_custom_call.1} parent=5 // pred_fallthru
        _
      %p260 = scmp.le.s32.totalorder 1, %s21
      %p261 = scmp.lt.s32.totalorder %s21, 3
      %p262 = pnand %p260, %p261
      %p263 = pneg %p262
      // Predicated region
      $region41: #{tpu_custom_call.1} parent=5 // pred_check
        _
      $region42: #{tpu_custom_call.1} parent=5 // pred_check_branch
        %265 = sbr.rel (%p262) target = $region44
      $region43: #{tpu_custom_call.1} parent=5 // pred_region
        %s266 = ssub.s32 %s21, 1
        %s267 = sand.u32 %s34, 1
        %s268 = scalar_lea.sflag [#allocation3], %s267
        %s269 = sand.u32 %s34, 1
        %s270 = smul.addr %s269, 8
        %s271 = scalar_lea.vmem [#allocation2], %s270
        // Predicated region
        $region45: #{tpu_custom_call.1} parent=43 // pred_check
          %p272 = pneg %p47
        $region46: #{tpu_custom_call.1} parent=43 // pred_check_branch
          %274 = sbr.rel (%p272) target = $region48
        $region47: #{tpu_custom_call.1} parent=43 // pred_region
          %275 = dma.done %s268, 128
        $region48: #{tpu_custom_call.1} parent=43 // pred_fallthru
          _
        %s276 = sand.u32 %s26, 1
        %s277 = scalar_lea.sflag [#allocation6], %s276
        %s278 = sand.u32 %s60, 1
        %s279 = smul.addr %s278, 8
        %s280 = scalar_lea.vmem [#allocation5], %s279
        // Predicated region
        $region49: #{tpu_custom_call.1} parent=43 // pred_check
          %p281 = pneg %p73
        $region50: #{tpu_custom_call.1} parent=43 // pred_check_branch
          %283 = sbr.rel (%p281) target = $region52
        $region51: #{tpu_custom_call.1} parent=43 // pred_region
          %284 = dma.done %s277, 128
        $region52: #{tpu_custom_call.1} parent=43 // pred_fallthru
          _
        // Predicated region
        $region53: #{tpu_custom_call.1} parent=43 // pred_check
          %p285 = pneg %p94
        $region54: #{tpu_custom_call.1} parent=43 // pred_check_branch
          %287 = sbr.rel (%p285) target = $region56
        $region55: #{tpu_custom_call.1} parent=43 // pred_region
          %288 = dma.done [#allocation6], 512
        $region56: #{tpu_custom_call.1} parent=43 // pred_fallthru
          _
        %s289 = sand.u32 %s34, 1
        %s290 = scalar_lea.sflag [#allocation3], %s289
        %s291 = sand.u32 %s34, 1
        %s292 = smul.addr %s291, 8
        %s293 = scalar_lea.vmem [#allocation2], %s292
        %p294 = pneg %p47
        %p295 = pneg %p44
        %s296 = sand.u32 %s26, 1
        %s297 = scalar_lea.sflag [#allocation6], %s296
        %s298 = sand.u32 %s60, 1
        %s299 = smul.addr %s298, 8
        %s300 = scalar_lea.vmem [#allocation5], %s299
        %p301 = pneg %p73
        %p302 = pneg %p70
        %p303 = pneg %p94
        %p304 = pneg %p91
        %p305 = pneg %p115
        %p306 = pneg %p112
        %p307 = pneg %p136
        %p308 = pneg %p133
        %p309 = pneg %p157
        %p310 = pneg %p154
        %p311 = pneg %p183
        %p312 = pneg %p180
        %s313 = sand.u32 %s170, 1
        %s314 = scalar_lea.sflag [#allocation4], %s313
        %s315 = sand.u32 %s170, 1
        %s316 = smul.addr %s315, 8
        %s317 = scalar_lea.vmem [#allocation8], %s316
        %v318 = vld [vmem:[%s271] sm:$0xff]
        %v319 = vld [vmem:[#allocation7] sm:$0xff]
        %v320 = vld [vmem:[#allocation7 + $0x8] sm:$0xff]
        %v321 = vld [vmem:[#allocation7 + $0x10] sm:$0xff]
        %v322 = vld [vmem:[#allocation7 + $0x18] sm:$0xff]
        %v323 = vld [vmem:[%s3] sm:$0x1]
        %v325 = vlaneseq
        %v326 = vshrl.u32 %v325, 7
        %v327 = vsub.s32 0, %v326
        %v328 = vrot.slane %v323, %v327
        %vm330 = vcmask 261120
        %v332 = vsel %vm330, %v318, 0
        %v335 = vsel %vm330, %v319, 0
        %v338 = vsel %vm330, %v320, 0
        %v341 = vsel %vm330, %v321, 0
        %v344 = vsel %vm330, %v322, 0
        %346 = vmatprep.subr.mxu0 0.0
        %347 = vmatpush1.xpose.msra.mxu0 %v335
        %348 = vmatprep.subr.mxu0 0.0
        %349 = vmatpush1.xpose.msra.mxu0 %v338
        %350 = vmatprep.subr.mxu0 0.0
        %351 = vmatpush1.xpose.msra.mxu0 %v341
        %352 = vmatprep.subr.mxu0 0.0
        %353 = vmatpush1.xpose.msra.mxu0 %v344
        %354 = vmatprep.subr.mxu0 0.0
        %355 = vmatpush1.xpose.msra.mxu0 0.0
        %356 = vmatprep.subr.mxu0 0.0
        %357 = vmatpush1.xpose.msra.mxu0 0.0
        %358 = vmatprep.subr.mxu0 0.0
        %359 = vmatpush1.xpose.msra.mxu0 0.0
        %360 = vmatprep.subr.mxu0 0.0
        %361 = vmatpush1.xpose.msra.mxu0 0.0
        %362 = vmatprep.subr.mxu0 0.0
        %363 = vmatpush1.xpose.msra.mxu0 0.0
        %364 = vmatprep.subr.mxu0 0.0
        %365 = vmatpush1.xpose.msra.mxu0 0.0
        %366 = vmatprep.subr.mxu0 0.0
        %367 = vmatpush1.xpose.msra.mxu0 0.0
        %368 = vmatprep.subr.mxu0 0.0
        %369 = vmatpush1.xpose.msra.mxu0 0.0
        %370 = vmatprep.subr.mxu0 0.0
        %371 = vmatpush1.xpose.msra.mxu0 0.0
        %372 = vmatprep.subr.mxu0 0.0
        %373 = vmatpush1.xpose.msra.mxu0 0.0
        %374 = vmatprep.subr.mxu0 0.0
        %375 = vmatpush1.xpose.msra.mxu0 0.0
        %376 = vmatprep.subr.mxu0 0.0
        %377 = vmatpush1.xpose.msra.mxu0 0.0
        %378 = vmatprep.subr.mxu0 0.0
        %379 = vmatpush1.xpose.msra.mxu0 0.0
        %380 = vmatprep.subr.mxu0 0.0
        %381 = vmatpush1.xpose.msra.mxu0 0.0
        %382 = vmatprep.subr.mxu0 0.0
        %383 = vmatpush1.xpose.msra.mxu0 0.0
        %384 = vmatprep.subr.mxu0 0.0
        %385 = vmatpush1.xpose.msra.mxu0 0.0
        %386 = vmatprep.subr.mxu0 0.0
        %387 = vmatpush1.xpose.msra.mxu0 0.0
        %388 = vmatprep.subr.mxu0 0.0
        %389 = vmatpush1.xpose.msra.mxu0 0.0
        %390 = vmatprep.subr.mxu0 0.0
        %391 = vmatpush1.xpose.msra.mxu0 0.0
        %392 = vmatprep.subr.mxu0 0.0
        %393 = vmatpush1.xpose.msra.mxu0 0.0
        %394 = vmatprep.subr.mxu0 0.0
        %395 = vmatpush1.xpose.msra.mxu0 0.0
        %396 = vmatprep.subr.mxu0 0.0
        %397 = vmatpush1.xpose.msra.mxu0 0.0
        %398 = vmatprep.subr.mxu0 0.0
        %399 = vmatpush1.xpose.msra.mxu0 0.0
        %400 = vmatprep.subr.mxu0 0.0
        %401 = vmatpush1.xpose.msra.mxu0 0.0
        %402 = vmatprep.subr.mxu0 0.0
        %403 = vmatpush1.xpose.msra.mxu0 0.0
        %404 = vmatprep.subr.mxu0 0.0
        %405 = vmatpush1.xpose.msra.mxu0 0.0
        %406 = vmatprep.subr.mxu0 0.0
        %407 = vmatpush1.xpose.msra.mxu0 0.0
        %408 = vmatprep.subr.mxu0 0.0
        %409 = vmatpush1.xpose.msra.mxu0 0.0
        %410 = vmatprep.mubr.f32.mxu0 0.0
        %411 = vmatmul.mubr.f32.gmra.mrb[0].mxu0 %v332
        %v412 = vpop.f32.mrb[0].mxu0
        %v413 = vadd.f32 %v328, %v412
        %v414 = vpop.f32.mrb[0].mxu0
        %415 = vdwg.mxu0
        %v416 = vld [vmem:[%s280] sm:$0xff]
        %v417 = vadd.f32 %v413, %v416
        %v418 = vsel %vm330, %v417, 0.0
        %419 = vadd.xlane.f32.xlu0 %v418
        %v420 = vpop.xlane.xlu0 %419
        %v421 = vrcp.pop 32.0
        %v422 = vmul.f32 %v420, %v421
        %v423 = vsub.f32 %v417, %v422
        %v424 = vmul.f32 %v423, %v423
        %v425 = vsel %vm330, %v424, 0.0
        %426 = vadd.xlane.f32.xlu0 %v425
        %v427 = vpop.xlane.xlu0 %426
        %v428 = vmul.f32 %v427, %v421
        %v429 = vadd.f32 %v428, 1e-12
        %v430 = vrsqrt.pop %v429
        %v431 = vmul.f32 %v423, %v430
        %v432 = vld [vmem:[%s4] sm:$0x1]
        %v434 = vlaneseq
        %v435 = vshrl.u32 %v434, 7
        %v436 = vsub.s32 0, %v435
        %v437 = vrot.slane %v432, %v436
        %v439 = vmul.f32 %v431, %v437
        %v440 = vld [vmem:[%s5] sm:$0x1]
        %v442 = vlaneseq
        %v443 = vshrl.u32 %v442, 7
        %v444 = vsub.s32 0, %v443
        %v445 = vrot.slane %v440, %v444
        %v447 = vadd.f32 %v439, %v445
        %448 = vst.msk [vmem:[%s317] sm:$0xff] %vm330, %v447
        %s449 = sand.u32 %s170, 1
        %s450 = scalar_lea.sflag [#allocation4], %s449
        %s451 = sand.u32 %s170, 1
        %s452 = smul.addr %s451, 8
        %s453 = scalar_lea.vmem [#allocation8], %s452
        // Predicated region
        $region57: #{tpu_custom_call.1} parent=43 // pred_check
          %p454 = pneg %p180
        $region58: #{tpu_custom_call.1} parent=43 // pred_check_branch
          %456 = sbr.rel (%p454) target = $region60
        $region59: #{tpu_custom_call.1} parent=43 // pred_region
          %s458 = ssub.s32 128, 128
          %459 = vsyncadd %s450, %s458
          %s460 = smul.addr %s26, 128
          %s461 = scalar_lea.hbm %s6, %s460
          %s463 = sshll.u32 %s453, 4
          %s464 = int_to_ptr.vmem [resolvable:$true] %s463
          %466 = dma.vmem_to_hbm [thread:$0]  %s464, 128, %s461, %s450
        $region60: #{tpu_custom_call.1} parent=43 // pred_fallthru
          _
      $region44: #{tpu_custom_call.1} parent=5 // pred_fallthru
        _
      %p467 = scmp.le.s32.totalorder 2, %s21
      // Predicated region
      $region61: #{tpu_custom_call.1} parent=5 // pred_check
        %p468 = pneg %p467
      $region62: #{tpu_custom_call.1} parent=5 // pred_check_branch
        %470 = sbr.rel (%p468) target = $region64
      $region63: #{tpu_custom_call.1} parent=5 // pred_region
        %s471 = ssub.s32 %s21, 2
        // Predicated region
        $region65: #{tpu_custom_call.1} parent=63 // pred_check
          %p472 = pneg %p186
        $region66: #{tpu_custom_call.1} parent=63 // pred_check_branch
          %474 = sbr.rel (%p472) target = $region68
        $region67: #{tpu_custom_call.1} parent=63 // pred_region
          %s475 = sand.u32 %s171, 1
          %s476 = scalar_lea.sflag [#allocation4], %s475
          %s477 = sand.u32 %s171, 1
          %s478 = smul.addr %s477, 8
          %s479 = scalar_lea.vmem [#allocation8], %s478
          %480 = dma.done %s476, 128
        $region68: #{tpu_custom_call.1} parent=63 // pred_fallthru
          _
      $region64: #{tpu_custom_call.1} parent=5 // pred_fallthru
        _
    $region6: #{tpu_custom_call.1} parent=1 // loop_footer
      %s25 = sadd.s32 1, %s21
    $region7: #{tpu_custom_call.1} parent=1 // loop_footer_branch
      %20 = sbr.rel target = $region3
    $region8: #{tpu_custom_call.1} parent=1 // loop_exit
      _
    %481 = vsyncpa [#allocation3], 1
    %s482 = scalar_lea.sflag [#allocation3], 1
    %483 = vsyncpa %s482, 1
    %484 = vsyncpa [#allocation6], 1
    %s485 = scalar_lea.sflag [#allocation6], 1
    %486 = vsyncpa %s485, 1
    %487 = vsyncpa [#allocation4], 1
    %s488 = scalar_lea.sflag [#allocation4], 1
    %489 = vsyncpa %s488, 1

// kernel: tpu_custom_call.1
$region0: #{tpu_custom_call.1}
  #allocation0 [shape = 'u32[]', space=smem, size = 0x4, offset = 0x4, fixed_abs, tag = 'smem constant byte address 0x4 - core index']
  #allocation1 [shape = 'u32[144,128]{1,0:T(1,128)}', space=vmem, size = 0x12000, scoped, tag = 'internal scratch']
  %s0 = inlined_call_operand.hbm [shape: f32[16,32], index: 0, kind: input, shape index: {}]
  %s1 = inlined_call_operand.hbm [shape: f32[16,32], index: 1, kind: input, shape index: {}]
  %s2 = inlined_call_operand.hbm [shape: f32[32,32], index: 2, kind: input, shape index: {}]
  %s3 = inlined_call_operand.vmem [shape: f32[1,32], index: 3, kind: input, shape index: {}]
  %s4 = inlined_call_operand.vmem [shape: f32[1,32], index: 4, kind: input, shape index: {}]
  %s5 = inlined_call_operand.vmem [shape: f32[1,32], index: 5, kind: input, shape index: {}]
  %s6 = inlined_call_operand.hbm [shape: f32[16,32], index: 6, kind: output, shape index: {}]
  %s7 = sld [smem:[#allocation0]]
  $region69: #{tpu_custom_call.1} parent=0
    _
  %s9 = ssub.s32 1, %s7
  %s10 = scalar_select 0, %s9, %s7
  $region1: #{tpu_custom_call.1} parent=0
    #allocation2 [shape = 'u8[8192]{0}', space=vmem, size = 0x2000, scoped, tag = 'input window, operand 0']
    #allocation3 [shape = 's32[2]{0}', space=sflag, size = 0x8, scoped, tag = 'scoped memory for tpu_custom_call.1']
    #allocation4 [shape = 's32[2]{0}', space=sflag, size = 0x8, scoped, tag = 'scoped memory for tpu_custom_call.1']
    #allocation5 [shape = 'u8[8192]{0}', space=vmem, size = 0x2000, scoped, tag = 'input window, operand 1']
    #allocation6 [shape = 's32[2]{0}', space=sflag, size = 0x8, scoped, tag = 'scoped memory for tpu_custom_call.1']
    #allocation7 [shape = 'u8[16384]{0}', space=vmem, size = 0x4000, scoped, tag = 'input window, operand 2, single buffered']
    #allocation8 [shape = 'u8[8192]{0}', space=vmem, size = 0x2000, scoped, tag = 'output window, operand 0']
    %11 = vsyncpa [#allocation3], 0
    %s12 = scalar_lea.sflag [#allocation3], 1
    %13 = vsyncpa %s12, 0
    %14 = vsyncpa [#allocation6], 0
    %s15 = scalar_lea.sflag [#allocation6], 1
    %16 = vsyncpa %s15, 0
    %17 = vsyncpa [#allocation4], 0
    %s18 = scalar_lea.sflag [#allocation4], 1
    %19 = vsyncpa %s18, 0
    loop: start=0, step=1, limit=4
    $region2: #{tpu_custom_call.1} parent=1 // loop_pre_header
      _
    $region3: #{tpu_custom_call.1} parent=1 // loop_header
      %s21 = sphi 0, %s25
      %p22 = scmp.ge.s32.totalorder %s21, 4
      %s31 = sphi 0, %s33
      %s34 = sphi 0, %s31
      %s35 = sphi 0, %s34
      %s51 = sphi 0, %s35
      %s57 = sphi 0, %s59
      %s60 = sphi 0, %s57
      %s61 = sphi 0, %s60
      %s77 = sphi 0, %s61
      %s81 = sphi 0, %s81
      %s83 = sphi 0, %s81
      %s84 = sphi 0, %s83
      %s98 = sphi 0, %s84
      %s102 = sphi 0, %s102
      %s104 = sphi 0, %s102
      %s105 = sphi 0, %s104
      %s119 = sphi 0, %s105
      %s123 = sphi 0, %s123
      %s125 = sphi 0, %s123
      %s126 = sphi 0, %s125
      %s140 = sphi 0, %s126
      %s144 = sphi 0, %s144
      %s146 = sphi 0, %s144
      %s147 = sphi 0, %s146
      %s161 = sphi 0, %s147
      %s167 = sphi 0, %s169
      %s170 = sphi 0, %s167
      %s171 = sphi 0, %s170
      %s187 = sphi 0, %s171
    $region4: #{tpu_custom_call.1} parent=1 // loop_header_branch
      %24 = sbr.rel (%p22) target = $region8
    $region5: #{tpu_custom_call.1} parent=1 // loop_body
      %s26 = ssub.s32 %s21, 1
      %s27 = ssub.s32 %s21, 2
      %s28 = sadd.s32 %s21, 1
      %s29 = ssub.s32 %s21, %s28
      %p30 = scmp.eq.s32.totalorder %s29, 0
      %s32 = sadd.s32 %s31, 1
      %s33 = scalar_select %p30, %s31, %s32
      %p36 = pneg %p30
      %p37 = scmp.eq.s32.totalorder %s21, 1
      %p38 = por %p36, %p37
      %p39 = scmp.ne.s32.totalorder %s31, %s34
      %p40 = scmp.eq.s32.totalorder %s21, 0
      %p41 = por %p39, %p40
      %p42 = scmp.ne.s32.totalorder %s31, %s34
      %p43 = scmp.eq.s32.totalorder %s26, 1
      %p44 = por %p42, %p43
      %p45 = scmp.ne.s32.totalorder %s34, %s35
      %p46 = scmp.eq.s32.totalorder %s26, 0
      %p47 = por %p45, %p46
      %p48 = scmp.ne.s32.totalorder %s34, %s35
      %p49 = scmp.eq.s32.totalorder %s27, 1
      %p50 = por %p48, %p49
      %p52 = scmp.ne.s32.totalorder %s35, %s51
      %p53 = scmp.eq.s32.totalorder %s27, 0
      %p54 = por %p52, %p53
      %s55 = ssub.s32 %s21, %s28
      %p56 = scmp.eq.s32.totalorder %s55, 0
      %s58 = sadd.s32 %s57, 1
      %s59 = scalar_select %p56, %s57, %s58
      %p62 = pneg %p56
      %p63 = scmp.eq.s32.totalorder %s21, 1
      %p64 = por %p62, %p63
      %p65 = scmp.ne.s32.totalorder %s57, %s60
      %p66 = scmp.eq.s32.totalorder %s21, 0
      %p67 = por %p65, %p66
      %p68 = scmp.ne.s32.totalorder %s57, %s60
      %p69 = scmp.eq.s32.totalorder %s26, 1
      %p70 = por %p68, %p69
      %p71 = scmp.ne.s32.totalorder %s60, %s61
      %p72 = scmp.eq.s32.totalorder %s26, 0
      %p73 = por %p71, %p72
      %p74 = scmp.ne.s32.totalorder %s60, %s61
      %p75 = scmp.eq.s32.totalorder %s27, 1
      %p76 = por %p74, %p75
      %p78 = scmp.ne.s32.totalorder %s61, %s77
      %p79 = scmp.eq.s32.totalorder %s27, 0
      %p80 = por %p78, %p79
      %s82 = sadd.s32 %s81, 1
      %p85 = scmp.eq.s32.totalorder %s21, 1
      %p86 = scmp.ne.s32.totalorder %s81, %s83
      %p87 = scmp.eq.s32.totalorder %s21, 0
      %p88 = por %p86, %p87
      %p89 = scmp.ne.s32.totalorder %s81, %s83
      %p90 = scmp.eq.s32.totalorder %s26, 1
      %p91 = por %p89, %p90
      %p92 = scmp.ne.s32.totalorder %s83, %s84
      %p93 = scmp.eq.s32.totalorder %s26, 0
      %p94 = por %p92, %p93
      %p95 = scmp.ne.s32.totalorder %s83, %s84
      %p96 = scmp.eq.s32.totalorder %s27, 1
      %p97 = por %p95, %p96
      %p99 = scmp.ne.s32.totalorder %s84, %s98
      %p100 = scmp.eq.s32.totalorder %s27, 0
      %p101 = por %p99, %p100
      %s103 = sadd.s32 %s102, 1
      %p106 = scmp.eq.s32.totalorder %s21, 1
      %p107 = scmp.ne.s32.totalorder %s102, %s104
      %p108 = scmp.eq.s32.totalorder %s21, 0
      %p109 = por %p107, %p108
      %p110 = scmp.ne.s32.totalorder %s102, %s104
      %p111 = scmp.eq.s32.totalorder %s26, 1
      %p112 = por %p110, %p111
      %p113 = scmp.ne.s32.totalorder %s104, %s105
      %p114 = scmp.eq.s32.totalorder %s26, 0
      %p115 = por %p113, %p114
      %p116 = scmp.ne.s32.totalorder %s104, %s105
      %p117 = scmp.eq.s32.totalorder %s27, 1
      %p118 = por %p116, %p117
      %p120 = scmp.ne.s32.totalorder %s105, %s119
      %p121 = scmp.eq.s32.totalorder %s27, 0
      %p122 = por %p120, %p121
      %s124 = sadd.s32 %s123, 1
      %p127 = scmp.eq.s32.totalorder %s21, 1
      %p128 = scmp.ne.s32.totalorder %s123, %s125
      %p129 = scmp.eq.s32.totalorder %s21, 0
      %p130 = por %p128, %p129
      %p131 = scmp.ne.s32.totalorder %s123, %s125
      %p132 = scmp.eq.s32.totalorder %s26, 1
      %p133 = por %p131, %p132
      %p134 = scmp.ne.s32.totalorder %s125, %s126
      %p135 = scmp.eq.s32.totalorder %s26, 0
      %p136 = por %p134, %p135
      %p137 = scmp.ne.s32.totalorder %s125, %s126
      %p138 = scmp.eq.s32.totalorder %s27, 1
      %p139 = por %p137, %p138
      %p141 = scmp.ne.s32.totalorder %s126, %s140
      %p142 = scmp.eq.s32.totalorder %s27, 0
      %p143 = por %p141, %p142
      %s145 = sadd.s32 %s144, 1
      %p148 = scmp.eq.s32.totalorder %s21, 1
      %p149 = scmp.ne.s32.totalorder %s144, %s146
      %p150 = scmp.eq.s32.totalorder %s21, 0
      %p151 = por %p149, %p150
      %p152 = scmp.ne.s32.totalorder %s144, %s146
      %p153 = scmp.eq.s32.totalorder %s26, 1
      %p154 = por %p152, %p153
      %p155 = scmp.ne.s32.totalorder %s146, %s147
      %p156 = scmp.eq.s32.totalorder %s26, 0
      %p157 = por %p155, %p156
      %p158 = scmp.ne.s32.totalorder %s146, %s147
      %p159 = scmp.eq.s32.totalorder %s27, 1
      %p160 = por %p158, %p159
      %p162 = scmp.ne.s32.totalorder %s147, %s161
      %p163 = scmp.eq.s32.totalorder %s27, 0
      %p164 = por %p162, %p163
      %s165 = ssub.s32 %s21, %s28
      %p166 = scmp.eq.s32.totalorder %s165, 0
      %s168 = sadd.s32 %s167, 1
      %s169 = scalar_select %p166, %s167, %s168
      %p172 = pneg %p166
      %p173 = scmp.eq.s32.totalorder %s21, 1
      %p174 = por %p172, %p173
      %p175 = scmp.ne.s32.totalorder %s167, %s170
      %p176 = scmp.eq.s32.totalorder %s21, 0
      %p177 = por %p175, %p176
      %p178 = scmp.ne.s32.totalorder %s167, %s170
      %p179 = scmp.eq.s32.totalorder %s26, 1
      %p180 = por %p178, %p179
      %p181 = scmp.ne.s32.totalorder %s170, %s171
      %p182 = scmp.eq.s32.totalorder %s26, 0
      %p183 = por %p181, %p182
      %p184 = scmp.ne.s32.totalorder %s170, %s171
      %p185 = scmp.eq.s32.totalorder %s27, 1
      %p186 = por %p184, %p185
      %p188 = scmp.ne.s32.totalorder %s171, %s187
      %p189 = scmp.eq.s32.totalorder %s27, 0
      %p190 = por %p188, %p189
      %p191 = scmp.le.s32.totalorder 1, %s21
      %p192 = scmp.lt.s32.totalorder %s21, 3
      %p193 = pnand %p191, %p192
      %p194 = pneg %p193
      // Predicated region
      $region9: #{tpu_custom_call.1} parent=5 // pred_check
        _
      $region10: #{tpu_custom_call.1} parent=5 // pred_check_branch
        %196 = sbr.rel (%p193) target = $region12
      $region11: #{tpu_custom_call.1} parent=5 // pred_region
        %s197 = ssub.s32 %s21, 1
        // Predicated region
        $region13: #{tpu_custom_call.1} parent=11 // pred_check
          %p198 = pneg %p94
        $region14: #{tpu_custom_call.1} parent=11 // pred_check_branch
          %200 = sbr.rel (%p198) target = $region16
        $region15: #{tpu_custom_call.1} parent=11 // pred_region
          %s202 = ssub.s32 512, 512
          %203 = vsyncadd [#allocation6], %s202
          %s204 = sshll.u32 [#allocation7], 4
          %s205 = int_to_ptr.vmem [resolvable:$true] %s204
          %210 = dma.hbm_to_vmem [thread:$0]  %s2, 512, %s205, [#allocation6], 128, 128, 8
        $region16: #{tpu_custom_call.1} parent=11 // pred_fallthru
          _
        // Predicated region
        $region17: #{tpu_custom_call.1} parent=11 // pred_check
          %p211 = pneg %p115
        $region18: #{tpu_custom_call.1} parent=11 // pred_check_branch
          %213 = sbr.rel (%p211) target = $region20
        $region19: #{tpu_custom_call.1} parent=11 // pred_region
          _
        $region20: #{tpu_custom_call.1} parent=11 // pred_fallthru
          _
        // Predicated region
        $region21: #{tpu_custom_call.1} parent=11 // pred_check
          %p214 = pneg %p136
        $region22: #{tpu_custom_call.1} parent=11 // pred_check_branch
          %216 = sbr.rel (%p214) target = $region24
        $region23: #{tpu_custom_call.1} parent=11 // pred_region
          _
        $region24: #{tpu_custom_call.1} parent=11 // pred_fallthru
          _
        // Predicated region
        $region25: #{tpu_custom_call.1} parent=11 // pred_check
          %p217 = pneg %p157
        $region26: #{tpu_custom_call.1} parent=11 // pred_check_branch
          %219 = sbr.rel (%p217) target = $region28
        $region27: #{tpu_custom_call.1} parent=11 // pred_region
          _
        $region28: #{tpu_custom_call.1} parent=11 // pred_fallthru
          _
      $region12: #{tpu_custom_call.1} parent=5 // pred_fallthru
        _
      %p220 = scmp.lt.s32.totalorder %s21, 2
      // Predicated region
      $region29: #{tpu_custom_call.1} parent=5 // pred_check
        %p221 = pneg %p220
      $region30: #{tpu_custom_call.1} parent=5 // pred_check_branch
        %223 = sbr.rel (%p221) target = $region32
      $region31: #{tpu_custom_call.1} parent=5 // pred_region
        // Predicated region
        $region33: #{tpu_custom_call.1} parent=31 // pred_check
          %p224 = pneg %p41
        $region34: #{tpu_custom_call.1} parent=31 // pred_check_branch
          %226 = sbr.rel (%p224) target = $region36
        $region35: #{tpu_custom_call.1} parent=31 // pred_region
          %s227 = sand.u32 %s31, 1
          %s228 = scalar_lea.sflag [#allocation3], %s227
          %s229 = sand.u32 %s31, 1
          %s230 = smul.addr %s229, 8
          %s231 = scalar_lea.vmem [#allocation2], %s230
          %s233 = ssub.s32 128, 128
          %234 = vsyncadd %s228, %s233
          %s235 = smul.addr %s21, 128
          %s236 = scalar_lea.hbm %s0, %s235
          %s238 = sshll.u32 %s231, 4
          %s239 = int_to_ptr.vmem [resolvable:$true] %s238
          %241 = dma.hbm_to_vmem [thread:$0]  %s236, 128, %s239, %s228
        $region36: #{tpu_custom_call.1} parent=31 // pred_fallthru
          _
        // Predicated region
        $region37: #{tpu_custom_call.1} parent=31 // pred_check
          %p242 = pneg %p67
        $region38: #{tpu_custom_call.1} parent=31 // pred_check_branch
          %244 = sbr.rel (%p242) target = $region40
        $region39: #{tpu_custom_call.1} parent=31 // pred_region
          %s245 = sand.u32 %s21, 1
          %s246 = scalar_lea.sflag [#allocation6], %s245
          %s247 = sand.u32 %s57, 1
          %s248 = smul.addr %s247, 8
          %s249 = scalar_lea.vmem [#allocation5], %s248
          %s251 = ssub.s32 128, 128
          %252 = vsyncadd %s246, %s251
          %s253 = smul.addr %s21, 128
          %s254 = scalar_lea.hbm %s1, %s253
          %s256 = sshll.u32 %s249, 4
          %s257 = int_to_ptr.vmem [resolvable:$true] %s256
          %259 = dma.hbm_to_vmem [thread:$0]  %s254, 128, %s257, %s246
        $region40: #{tpu_custom_call.1} parent=31 // pred_fallthru
          _
      $region32: #{tpu_custom_call.1} parent=5 // pred_fallthru
        _
      %p260 = scmp.le.s32.totalorder 1, %s21
      %p261 = scmp.lt.s32.totalorder %s21, 3
      %p262 = pnand %p260, %p261
      %p263 = pneg %p262
      // Predicated region
      $region41: #{tpu_custom_call.1} parent=5 // pred_check
        _
      $region42: #{tpu_custom_call.1} parent=5 // pred_check_branch
        %265 = sbr.rel (%p262) target = $region44
      $region43: #{tpu_custom_call.1} parent=5 // pred_region
        %s266 = ssub.s32 %s21, 1
        %s267 = sand.u32 %s34, 1
        %s268 = scalar_lea.sflag [#allocation3], %s267
        %s269 = sand.u32 %s34, 1
        %s270 = smul.addr %s269, 8
        %s271 = scalar_lea.vmem [#allocation2], %s270
        // Predicated region
        $region45: #{tpu_custom_call.1} parent=43 // pred_check
          %p272 = pneg %p47
        $region46: #{tpu_custom_call.1} parent=43 // pred_check_branch
          %274 = sbr.rel (%p272) target = $region48
        $region47: #{tpu_custom_call.1} parent=43 // pred_region
          %275 = dma.done %s268, 128
        $region48: #{tpu_custom_call.1} parent=43 // pred_fallthru
          _
        %s276 = sand.u32 %s26, 1
        %s277 = scalar_lea.sflag [#allocation6], %s276
        %s278 = sand.u32 %s60, 1
        %s279 = smul.addr %s278, 8
        %s280 = scalar_lea.vmem [#allocation5], %s279
        // Predicated region
        $region49: #{tpu_custom_call.1} parent=43 // pred_check
          %p281 = pneg %p73
        $region50: #{tpu_custom_call.1} parent=43 // pred_check_branch
          %283 = sbr.rel (%p281) target = $region52
        $region51: #{tpu_custom_call.1} parent=43 // pred_region
          %284 = dma.done %s277, 128
        $region52: #{tpu_custom_call.1} parent=43 // pred_fallthru
          _
        // Predicated region
        $region53: #{tpu_custom_call.1} parent=43 // pred_check
          %p285 = pneg %p94
        $region54: #{tpu_custom_call.1} parent=43 // pred_check_branch
          %287 = sbr.rel (%p285) target = $region56
        $region55: #{tpu_custom_call.1} parent=43 // pred_region
          %288 = dma.done [#allocation6], 512
        $region56: #{tpu_custom_call.1} parent=43 // pred_fallthru
          _
        %s289 = sand.u32 %s34, 1
        %s290 = scalar_lea.sflag [#allocation3], %s289
        %s291 = sand.u32 %s34, 1
        %s292 = smul.addr %s291, 8
        %s293 = scalar_lea.vmem [#allocation2], %s292
        %p294 = pneg %p47
        %p295 = pneg %p44
        %s296 = sand.u32 %s26, 1
        %s297 = scalar_lea.sflag [#allocation6], %s296
        %s298 = sand.u32 %s60, 1
        %s299 = smul.addr %s298, 8
        %s300 = scalar_lea.vmem [#allocation5], %s299
        %p301 = pneg %p73
        %p302 = pneg %p70
        %p303 = pneg %p94
        %p304 = pneg %p91
        %p305 = pneg %p115
        %p306 = pneg %p112
        %p307 = pneg %p136
        %p308 = pneg %p133
        %p309 = pneg %p157
        %p310 = pneg %p154
        %p311 = pneg %p183
        %p312 = pneg %p180
        %s313 = sand.u32 %s170, 1
        %s314 = scalar_lea.sflag [#allocation4], %s313
        %s315 = sand.u32 %s170, 1
        %s316 = smul.addr %s315, 8
        %s317 = scalar_lea.vmem [#allocation8], %s316
        %v318 = vld [vmem:[%s271] sm:$0xff]
        %v319 = vld [vmem:[#allocation7] sm:$0xff]
        %v320 = vld [vmem:[#allocation7 + $0x8] sm:$0xff]
        %v321 = vld [vmem:[#allocation7 + $0x10] sm:$0xff]
        %v322 = vld [vmem:[#allocation7 + $0x18] sm:$0xff]
        %v323 = vld [vmem:[%s3] sm:$0x1]
        %v325 = vlaneseq
        %v326 = vshrl.u32 %v325, 7
        %v327 = vsub.s32 0, %v326
        %v328 = vrot.slane %v323, %v327
        %vm330 = vcmask 261120
        %v332 = vsel %vm330, %v318, 0
        %v335 = vsel %vm330, %v319, 0
        %v338 = vsel %vm330, %v320, 0
        %v341 = vsel %vm330, %v321, 0
        %v344 = vsel %vm330, %v322, 0
        %346 = vmatprep.subr.mxu0 0.0
        %347 = vmatpush1.xpose.msra.mxu0 %v335
        %348 = vmatprep.subr.mxu0 0.0
        %349 = vmatpush1.xpose.msra.mxu0 %v338
        %350 = vmatprep.subr.mxu0 0.0
        %351 = vmatpush1.xpose.msra.mxu0 %v341
        %352 = vmatprep.subr.mxu0 0.0
        %353 = vmatpush1.xpose.msra.mxu0 %v344
        %354 = vmatprep.subr.mxu0 0.0
        %355 = vmatpush1.xpose.msra.mxu0 0.0
        %356 = vmatprep.subr.mxu0 0.0
        %357 = vmatpush1.xpose.msra.mxu0 0.0
        %358 = vmatprep.subr.mxu0 0.0
        %359 = vmatpush1.xpose.msra.mxu0 0.0
        %360 = vmatprep.subr.mxu0 0.0
        %361 = vmatpush1.xpose.msra.mxu0 0.0
        %362 = vmatprep.subr.mxu0 0.0
        %363 = vmatpush1.xpose.msra.mxu0 0.0
        %364 = vmatprep.subr.mxu0 0.0
        %365 = vmatpush1.xpose.msra.mxu0 0.0
        %366 = vmatprep.subr.mxu0 0.0
        %367 = vmatpush1.xpose.msra.mxu0 0.0
        %368 = vmatprep.subr.mxu0 0.0
        %369 = vmatpush1.xpose.msra.mxu0 0.0
        %370 = vmatprep.subr.mxu0 0.0
        %371 = vmatpush1.xpose.msra.mxu0 0.0
        %372 = vmatprep.subr.mxu0 0.0
        %373 = vmatpush1.xpose.msra.mxu0 0.0
        %374 = vmatprep.subr.mxu0 0.0
        %375 = vmatpush1.xpose.msra.mxu0 0.0
        %376 = vmatprep.subr.mxu0 0.0
        %377 = vmatpush1.xpose.msra.mxu0 0.0
        %378 = vmatprep.subr.mxu0 0.0
        %379 = vmatpush1.xpose.msra.mxu0 0.0
        %380 = vmatprep.subr.mxu0 0.0
        %381 = vmatpush1.xpose.msra.mxu0 0.0
        %382 = vmatprep.subr.mxu0 0.0
        %383 = vmatpush1.xpose.msra.mxu0 0.0
        %384 = vmatprep.subr.mxu0 0.0
        %385 = vmatpush1.xpose.msra.mxu0 0.0
        %386 = vmatprep.subr.mxu0 0.0
        %387 = vmatpush1.xpose.msra.mxu0 0.0
        %388 = vmatprep.subr.mxu0 0.0
        %389 = vmatpush1.xpose.msra.mxu0 0.0
        %390 = vmatprep.subr.mxu0 0.0
        %391 = vmatpush1.xpose.msra.mxu0 0.0
        %392 = vmatprep.subr.mxu0 0.0
        %393 = vmatpush1.xpose.msra.mxu0 0.0
        %394 = vmatprep.subr.mxu0 0.0
        %395 = vmatpush1.xpose.msra.mxu0 0.0
        %396 = vmatprep.subr.mxu0 0.0
        %397 = vmatpush1.xpose.msra.mxu0 0.0
        %398 = vmatprep.subr.mxu0 0.0
        %399 = vmatpush1.xpose.msra.mxu0 0.0
        %400 = vmatprep.subr.mxu0 0.0
        %401 = vmatpush1.xpose.msra.mxu0 0.0
        %402 = vmatprep.subr.mxu0 0.0
        %403 = vmatpush1.xpose.msra.mxu0 0.0
        %404 = vmatprep.subr.mxu0 0.0
        %405 = vmatpush1.xpose.msra.mxu0 0.0
        %406 = vmatprep.subr.mxu0 0.0
        %407 = vmatpush1.xpose.msra.mxu0 0.0
        %408 = vmatprep.subr.mxu0 0.0
        %409 = vmatpush1.xpose.msra.mxu0 0.0
        %410 = vmatprep.mubr.f32.mxu0 0.0
        %411 = vmatmul.mubr.f32.gmra.mrb[0].mxu0 %v332
        %v412 = vpop.f32.mrb[0].mxu0
        %v413 = vadd.f32 %v328, %v412
        %v414 = vpop.f32.mrb[0].mxu0
        %415 = vdwg.mxu0
        %v416 = vld [vmem:[%s280] sm:$0xff]
        %v417 = vadd.f32 %v413, %v416
        %v418 = vsel %vm330, %v417, 0.0
        %419 = vadd.xlane.f32.xlu0 %v418
        %v420 = vpop.xlane.xlu0 %419
        %v421 = vrcp.pop 32.0
        %v422 = vmul.f32 %v420, %v421
        %v423 = vsub.f32 %v417, %v422
        %v424 = vmul.f32 %v423, %v423
        %v425 = vsel %vm330, %v424, 0.0
        %426 = vadd.xlane.f32.xlu0 %v425
        %v427 = vpop.xlane.xlu0 %426
        %v428 = vmul.f32 %v427, %v421
        %v429 = vadd.f32 %v428, 1e-12
        %v430 = vrsqrt.pop %v429
        %v431 = vmul.f32 %v423, %v430
        %v432 = vld [vmem:[%s4] sm:$0x1]
        %v434 = vlaneseq
        %v435 = vshrl.u32 %v434, 7
        %v436 = vsub.s32 0, %v435
        %v437 = vrot.slane %v432, %v436
        %v439 = vmul.f32 %v431, %v437
        %v440 = vld [vmem:[%s5] sm:$0x1]
        %v442 = vlaneseq
        %v443 = vshrl.u32 %v442, 7
        %v444 = vsub.s32 0, %v443
        %v445 = vrot.slane %v440, %v444
        %v447 = vadd.f32 %v439, %v445
        %448 = vst.msk [vmem:[%s317] sm:$0xff] %vm330, %v447
        %s449 = sand.u32 %s170, 1
        %s450 = scalar_lea.sflag [#allocation4], %s449
        %s451 = sand.u32 %s170, 1
        %s452 = smul.addr %s451, 8
        %s453 = scalar_lea.vmem [#allocation8], %s452
        // Predicated region
        $region57: #{tpu_custom_call.1} parent=43 // pred_check
          %p454 = pneg %p180
        $region58: #{tpu_custom_call.1} parent=43 // pred_check_branch
          %456 = sbr.rel (%p454) target = $region60
        $region59: #{tpu_custom_call.1} parent=43 // pred_region
          %s458 = ssub.s32 128, 128
          %459 = vsyncadd %s450, %s458
          %s460 = smul.addr %s26, 128
          %s461 = scalar_lea.hbm %s6, %s460
          %s463 = sshll.u32 %s453, 4
          %s464 = int_to_ptr.vmem [resolvable:$true] %s463
          %466 = dma.vmem_to_hbm [thread:$0]  %s464, 128, %s461, %s450
        $region60: #{tpu_custom_call.1} parent=43 // pred_fallthru
          _
      $region44: #{tpu_custom_call.1} parent=5 // pred_fallthru
        _
      %p467 = scmp.le.s32.totalorder 2, %s21
      // Predicated region
      $region61: #{tpu_custom_call.1} parent=5 // pred_check
        %p468 = pneg %p467
      $region62: #{tpu_custom_call.1} parent=5 // pred_check_branch
        %470 = sbr.rel (%p468) target = $region64
      $region63: #{tpu_custom_call.1} parent=5 // pred_region
        %s471 = ssub.s32 %s21, 2
        // Predicated region
        $region65: #{tpu_custom_call.1} parent=63 // pred_check
          %p472 = pneg %p186
        $region66: #{tpu_custom_call.1} parent=63 // pred_check_branch
          %474 = sbr.rel (%p472) target = $region68
        $region67: #{tpu_custom_call.1} parent=63 // pred_region
          %s475 = sand.u32 %s171, 1
          %s476 = scalar_lea.sflag [#allocation4], %s475
          %s477 = sand.u32 %s171, 1
          %s478 = smul.addr %s477, 8
          %s479 = scalar_lea.vmem [#allocation8], %s478
          %480 = dma.done %s476, 128
        $region68: #{tpu_custom_call.1} parent=63 // pred_fallthru
          _
      $region64: #{tpu_custom_call.1} parent=5 // pred_fallthru
        _
    $region6: #{tpu_custom_call.1} parent=1 // loop_footer
      %s25 = sadd.s32 1, %s21
    $region7: #{tpu_custom_call.1} parent=1 // loop_footer_branch
      %20 = sbr.rel target = $region3
    $region8: #{tpu_custom_call.1} parent=1 // loop_exit
      _
    %481 = vsyncpa [#allocation3], 1
    %s482 = scalar_lea.sflag [#allocation3], 1
    %483 = vsyncpa %s482, 1
    %484 = vsyncpa [#allocation6], 1
    %s485 = scalar_lea.sflag [#allocation6], 1
    %486 = vsyncpa %s485, 1
    %487 = vsyncpa [#allocation4], 1
    %s488 = scalar_lea.sflag [#allocation4], 1
    %489 = vsyncpa %s488, 1

</llo_original>
